<compile_context>
chip_gen: v5e
topology: v5e:2x2
jax: 0.10.0
libtpu: 0.0.40
codegen_flags: <defaults>
</compile_context>

<pallas_src>
import jax
import jax.numpy as jnp
from jax.experimental import pallas as pl
from jax.experimental.pallas import tpu as pltpu

N_TAXA = 128   # dataset.n_taxa
L1 = 64        # layer_1_dim
L2 = 16        # layer_2_dim
BN_EPS = 1e-5
BIAS_W = max(L1, 2 * L2, N_TAXA)   # lane width of the packed bias slab


def vae_fwd_kernel(x_ref, w1_ref, wenc_ref, dw1_ref, dw2_ref, bias_ref, eps_ref,
                   out_ref):
    wdt = w1_ref.dtype              # matmul input dtype (f32 or bf16)
    bias = bias_ref[...]            # (4, BIAS_W) f32: [b1 | b_mu||b_ls | dec_b1 | dec_b2]

    x = x_ref[...]

    # encoder_l1: Linear -> ReLU   (Dropout = identity in eval; BN folded downstream)
    h = jnp.dot(x.astype(wdt), w1_ref[...], preferred_element_type=jnp.float32)
    h = jnp.maximum(h + bias[0:1, :L1], 0.0)

    # fused encoder_mu || encoder_logsigma (BN affine pre-folded into wenc/bias)
    y = jnp.dot(h.astype(wdt), wenc_ref[...], preferred_element_type=jnp.float32)
    y = y + bias[1:2, :2 * L2]
    mu = y[:, :L2]
    z = y[:, L2:]
    logsigma = jnp.maximum(z, 0.0) + jnp.log1p(jnp.exp(-jnp.abs(z)))  # stable softplus

    # reparameterize: mu + eps * exp(logsigma / 2)
    latent = mu + eps_ref[...] * jnp.exp(logsigma * 0.5)

    # decoder: Linear -> ReLU -> Linear -> ReLU -> Softmax(dim=1)
    d = jnp.dot(latent.astype(wdt), dw1_ref[...], preferred_element_type=jnp.float32)
    d = jnp.maximum(d + bias[2:3, :L1], 0.0)
    d = jnp.dot(d.astype(wdt), dw2_ref[...], preferred_element_type=jnp.float32)
    d = jnp.maximum(d + bias[3:4, :N_TAXA], 0.0)

    m = jnp.max(d, axis=-1, keepdims=True)
    e = jnp.exp(d - m)
    inv = pl.reciprocal(jnp.sum(e, axis=-1, keepdims=True), approx=False)
    out_ref[...] = (e * inv).astype(out_ref.dtype)


def vae_forward(x, packed_params, eps, *, tb=None):
    B = x.shape[0]
    w1, wenc, dw1, dw2, bias = packed_params
    if tb is None:
        # Big batch tile: VMEM is a non-issue at these sizes (<1 MiB per tile even at 512).
        # Use ~128 on v5e; 256-512 on v6e/v7x.  Small B -> one grid step.
        tb = min(B, 256)
    assert B % tb == 0, "batch must be divisible by the batch tile"

    # Grid-invariant weight slabs (block index constant across the batch grid axis).
    const = lambda shape: pl.BlockSpec(shape, lambda i: (0, 0))

    return pl.pallas_call(
        vae_fwd_kernel,
        out_shape=jax.ShapeDtypeStruct((B, N_TAXA), jnp.float32),
        grid=(B // tb,),
        in_specs=[
            pl.BlockSpec((tb, N_TAXA), lambda i: (i, 0)),   # x   (batch-tiled)
            const((N_TAXA, L1)),                            # encoder_l1 W
            const((L1, 2 * L2)),                            # fused mu||logsigma W (BN folded)
            const((L2, L1)),                                # decoder.0 W
            const((L1, N_TAXA)),                            # decoder.2 W
            const((4, BIAS_W)),                             # packed bias slab (f32)
            pl.BlockSpec((tb, L2), lambda i: (i, 0)),       # eps (batch-tiled)
        ],
        out_specs=pl.BlockSpec((tb, N_TAXA), lambda i: (i, 0)),
        compiler_params=pltpu.CompilerParams(dimension_semantics=("parallel",)),
    )(x, w1, wenc, dw1, dw2, bias, eps)


def init_params(key):
    """Deterministic PyTorch-Linear-style init: U(-1/sqrt(fan_in), 1/sqrt(fan_in))."""
    ks = jax.random.split(key, 5)

    def linear(k, fan_in, fan_out):
        kw, kb = jax.random.split(k)
        bound = 1.0 / float(jnp.sqrt(fan_in))
        w = jax.random.uniform(kw, (fan_in, fan_out), jnp.float32, -bound, bound)
        b = jax.random.uniform(kb, (1, fan_out), jnp.float32, -bound, bound)
        return w, b

    w1, b1 = linear(ks[0], N_TAXA, L1)
    wmu, bmu = linear(ks[1], L1, L2)
    wls, bls = linear(ks[2], L1, L2)
    dw1, db1 = linear(ks[3], L2, L1)
    dw2, db2 = linear(ks[4], L1, N_TAXA)
    gamma = jnp.ones((1, L1), jnp.float32)
    beta = jnp.zeros((1, L1), jnp.float32)
    rmean = jnp.zeros((1, L1), jnp.float32)
    rvar = jnp.ones((1, L1), jnp.float32)
    return (w1, b1, gamma, beta, rmean, rvar, wmu, bmu, wls, bls, dw1, db1, dw2, db2)


def pack_params(params, *, matmul_dtype=jnp.float32):
    """Host-side prep: fold eval-mode BN into the fused mu||logsigma layer, fuse the
    two encoder heads into one weight slab, and pack all biases into one (4, BIAS_W)
    f32 slab so the kernel takes 5 parameter arrays instead of 14."""
    (w1, b1, g, be, rm, rv, wmu, bmu, wls, bls, dw1, db1, dw2, db2) = params

    scale = g / jnp.sqrt(rv + BN_EPS)            # (1, L1)
    shift = be - rm * scale                      # (1, L1)
    wenc = jnp.concatenate([wmu, wls], axis=1)   # (L1, 2*L2)
    benc = jnp.concatenate([bmu, bls], axis=1)   # (1, 2*L2)
    wenc_f = scale.reshape(L1, 1) * wenc         # fold BN scale into weights
    benc_f = benc + shift @ wenc                 # fold BN shift into bias

    def pad_row(b):
        return jnp.pad(b, ((0, 0), (0, BIAS_W - b.shape[1])))

    bias = jnp.concatenate(
        [pad_row(b1), pad_row(benc_f), pad_row(db1), pad_row(db2)], axis=0
    ).astype(jnp.float32)                        # (4, BIAS_W)

    cast = lambda w: w.astype(matmul_dtype)
    return (cast(w1), cast(wenc_f), cast(dw1), cast(dw2), bias)


def vae_forward_ref(x, params, eps):
    """Pure-JAX reference of the same eval-mode forward pass (for verification)."""
    (w1, b1, g, be, rm, rv, wmu, bmu, wls, bls, dw1, db1, dw2, db2) = params
    h = jnp.maximum(x @ w1 + b1, 0.0)
    h = (h - rm) / jnp.sqrt(rv + BN_EPS) * g + be
    mu = h @ wmu + bmu
    logsigma = jax.nn.softplus(h @ wls + bls)
    latent = mu + eps * jnp.exp(logsigma / 2.0)
    d = jnp.maximum(latent @ dw1 + db1, 0.0)
    d = jnp.maximum(d @ dw2 + db2, 0.0)
    return jax.nn.softmax(d, axis=1)


if __name__ == "__main__":
    key = jax.random.PRNGKey(0)
    k_param, k_x, k_eps = jax.random.split(key, 3)

    B = 16
    params = init_params(k_param)
    x = jax.random.normal(k_x, (B, N_TAXA), jnp.float32)
    eps = jax.random.normal(k_eps, (B, L2), jnp.float32)

    ref = vae_forward_ref(x, params, eps)

    # f32 matmul path (tight tolerance vs. the f32 reference)
    out = vae_forward(x, pack_params(params), eps)
    out = jax.block_until_ready(out)
    assert out.shape == (B, N_TAXA)
    assert jnp.allclose(out, ref, atol=1e-5, rtol=1e-5)
    assert jnp.allclose(jnp.sum(out, axis=-1), 1.0, atol=1e-5)

    # bf16 MXU path (v6e/v7x fast path): bf16 matmul inputs, f32 accumulation,
    # elementwise math stays f32.  Looser tolerance vs. the f32 reference.
    out_bf16 = vae_forward(x, pack_params(params, matmul_dtype=jnp.bfloat16), eps)
    out_bf16 = jax.block_until_ready(out_bf16)
    assert out_bf16.shape == (B, N_TAXA)
    assert jnp.allclose(out_bf16, ref, atol=1e-2)
    assert jnp.allclose(jnp.sum(out_bf16, axis=-1), 1.0, atol=1e-4)

    print("KERNEL_OK")
</pallas_src>

<mosaic_0001>
module attributes {stable_mosaic.version = 11 : i64} {
  func.func @vae_fwd_kernel(%arg0: i32, %arg1: memref<16x128xf32, #tpu.memory_space<vmem>>, %arg2: memref<128x64xf32, #tpu.memory_space<vmem>>, %arg3: memref<64x32xf32, #tpu.memory_space<vmem>>, %arg4: memref<16x64xf32, #tpu.memory_space<vmem>>, %arg5: memref<64x128xf32, #tpu.memory_space<vmem>>, %arg6: memref<4x128xf32, #tpu.memory_space<vmem>>, %arg7: memref<16x16xf32, #tpu.memory_space<vmem>>, %arg8: memref<16x128xf32, #tpu.memory_space<vmem>>) attributes {dimension_semantics = [#tpu.dimension_semantics<parallel>], iteration_bounds = array<i64: 1>, scalar_prefetch = 0 : i64, scratch_operands = 0 : i64, tpu.core_type = #tpu.core_type<tc>, window_params = [{transform_indices = @transform_0, window_bounds = array<i64: 16, 128>}, {pipeline_mode = #tpu.pipeline_mode<synchronous>, transform_indices = @transform_1, window_bounds = array<i64: 128, 64>}, {pipeline_mode = #tpu.pipeline_mode<synchronous>, transform_indices = @transform_2, window_bounds = array<i64: 64, 32>}, {pipeline_mode = #tpu.pipeline_mode<synchronous>, transform_indices = @transform_3, window_bounds = array<i64: 16, 64>}, {pipeline_mode = #tpu.pipeline_mode<synchronous>, transform_indices = @transform_4, window_bounds = array<i64: 64, 128>}, {pipeline_mode = #tpu.pipeline_mode<synchronous>, transform_indices = @transform_5, window_bounds = array<i64: 4, 128>}, {transform_indices = @transform_6, window_bounds = array<i64: 16, 16>}, {transform_indices = @transform_7, window_bounds = array<i64: 16, 128>}]} {
    %c0 = arith.constant 0 : index
    %c0_0 = arith.constant 0 : index
    %0 = vector.load %arg6[%c0, %c0_0] : memref<4x128xf32, #tpu.memory_space<vmem>>, vector<4x128xf32>
    %c0_1 = arith.constant 0 : index
    %c0_2 = arith.constant 0 : index
    %1 = vector.load %arg1[%c0_1, %c0_2] : memref<16x128xf32, #tpu.memory_space<vmem>>, vector<16x128xf32>
    %c0_3 = arith.constant 0 : index
    %c0_4 = arith.constant 0 : index
    %2 = vector.load %arg2[%c0_3, %c0_4] : memref<128x64xf32, #tpu.memory_space<vmem>>, vector<128x64xf32>
    %cst = arith.constant dense<0.000000e+00> : vector<16x64xf32>
    %3 = tpu.matmul %1, %2, %cst {dimension_numbers = #tpu.dot_dimension_numbers<[1], [0], [0], [1], [0, 0, 1, 1], [], []>} : vector<16x128xf32>, vector<128x64xf32>, vector<16x64xf32> -> vector<16x64xf32>
    %4 = vector.extract_strided_slice %0 {offsets = [0, 0], sizes = [1, 64], strides = [1, 1]} : vector<4x128xf32> to vector<1x64xf32>
    %5 = vector.broadcast %4 : vector<1x64xf32> to vector<16x64xf32>
    %6 = arith.addf %3, %5 : vector<16x64xf32>
    %cst_5 = arith.constant 0.000000e+00 : f32
    %7 = vector.broadcast %cst_5 : f32 to vector<16x64xf32>
    %8 = arith.maximumf %6, %7 : vector<16x64xf32>
    %c0_6 = arith.constant 0 : index
    %c0_7 = arith.constant 0 : index
    %9 = vector.load %arg3[%c0_6, %c0_7] : memref<64x32xf32, #tpu.memory_space<vmem>>, vector<64x32xf32>
    %cst_8 = arith.constant dense<0.000000e+00> : vector<16x32xf32>
    %10 = tpu.matmul %8, %9, %cst_8 {dimension_numbers = #tpu.dot_dimension_numbers<[1], [0], [0], [1], [0, 0, 1, 1], [], []>} : vector<16x64xf32>, vector<64x32xf32>, vector<16x32xf32> -> vector<16x32xf32>
    %11 = vector.extract_strided_slice %0 {offsets = [1, 0], sizes = [1, 32], strides = [1, 1]} : vector<4x128xf32> to vector<1x32xf32>
    %12 = vector.broadcast %11 : vector<1x32xf32> to vector<16x32xf32>
    %13 = arith.addf %10, %12 : vector<16x32xf32>
    %14 = vector.extract_strided_slice %13 {offsets = [0, 0], sizes = [16, 16], strides = [1, 1]} : vector<16x32xf32> to vector<16x16xf32>
    %15 = vector.extract_strided_slice %13 {offsets = [0, 16], sizes = [16, 16], strides = [1, 1]} : vector<16x32xf32> to vector<16x16xf32>
    %cst_9 = arith.constant 0.000000e+00 : f32
    %16 = vector.broadcast %cst_9 : f32 to vector<16x16xf32>
    %17 = arith.maximumf %15, %16 : vector<16x16xf32>
    %18 = math.absf %15 : vector<16x16xf32>
    %cst_10 = arith.constant 0.000000e+00 : f32
    %19 = vector.broadcast %cst_10 : f32 to vector<16x16xf32>
    %20 = arith.subf %19, %18 : vector<16x16xf32>
    %21 = math.exp %20 : vector<16x16xf32>
    %22 = math.log1p %21 : vector<16x16xf32>
    %23 = arith.addf %17, %22 : vector<16x16xf32>
    %c0_11 = arith.constant 0 : index
    %c0_12 = arith.constant 0 : index
    %24 = vector.load %arg7[%c0_11, %c0_12] : memref<16x16xf32, #tpu.memory_space<vmem>>, vector<16x16xf32>
    %cst_13 = arith.constant 5.000000e-01 : f32
    %25 = vector.broadcast %cst_13 : f32 to vector<16x16xf32>
    %26 = arith.mulf %23, %25 : vector<16x16xf32>
    %27 = math.exp %26 : vector<16x16xf32>
    %28 = arith.mulf %24, %27 : vector<16x16xf32>
    %29 = arith.addf %14, %28 : vector<16x16xf32>
    %c0_14 = arith.constant 0 : index
    %c0_15 = arith.constant 0 : index
    %30 = vector.load %arg4[%c0_14, %c0_15] : memref<16x64xf32, #tpu.memory_space<vmem>>, vector<16x64xf32>
    %cst_16 = arith.constant dense<0.000000e+00> : vector<16x64xf32>
    %31 = tpu.matmul %29, %30, %cst_16 {dimension_numbers = #tpu.dot_dimension_numbers<[1], [0], [0], [1], [0, 0, 1, 1], [], []>} : vector<16x16xf32>, vector<16x64xf32>, vector<16x64xf32> -> vector<16x64xf32>
    %32 = vector.extract_strided_slice %0 {offsets = [2, 0], sizes = [1, 64], strides = [1, 1]} : vector<4x128xf32> to vector<1x64xf32>
    %33 = vector.broadcast %32 : vector<1x64xf32> to vector<16x64xf32>
    %34 = arith.addf %31, %33 : vector<16x64xf32>
    %cst_17 = arith.constant 0.000000e+00 : f32
    %35 = vector.broadcast %cst_17 : f32 to vector<16x64xf32>
    %36 = arith.maximumf %34, %35 : vector<16x64xf32>
    %c0_18 = arith.constant 0 : index
    %c0_19 = arith.constant 0 : index
    %37 = vector.load %arg5[%c0_18, %c0_19] : memref<64x128xf32, #tpu.memory_space<vmem>>, vector<64x128xf32>
    %cst_20 = arith.constant dense<0.000000e+00> : vector<16x128xf32>
    %38 = tpu.matmul %36, %37, %cst_20 {dimension_numbers = #tpu.dot_dimension_numbers<[1], [0], [0], [1], [0, 0, 1, 1], [], []>} : vector<16x64xf32>, vector<64x128xf32>, vector<16x128xf32> -> vector<16x128xf32>
    %39 = vector.extract_strided_slice %0 {offsets = [3, 0], sizes = [1, 128], strides = [1, 1]} : vector<4x128xf32> to vector<1x128xf32>
    %40 = vector.broadcast %39 : vector<1x128xf32> to vector<16x128xf32>
    %41 = arith.addf %38, %40 : vector<16x128xf32>
    %cst_21 = arith.constant 0.000000e+00 : f32
    %42 = vector.broadcast %cst_21 : f32 to vector<16x128xf32>
    %43 = arith.maximumf %41, %42 : vector<16x128xf32>
    %cst_22 = arith.constant dense<0xFF800000> : vector<16xf32>
    %44 = vector.multi_reduction <maximumf>, %43, %cst_22 [1] : vector<16x128xf32> to vector<16xf32>
    %45 = vector.shape_cast %44 : vector<16xf32> to vector<16x1xf32>
    %46 = vector.broadcast %45 : vector<16x1xf32> to vector<16x128xf32>
    %47 = arith.subf %43, %46 : vector<16x128xf32>
    %48 = math.exp %47 : vector<16x128xf32>
    %cst_23 = arith.constant dense<0.000000e+00> : vector<16xf32>
    %49 = vector.multi_reduction <add>, %48, %cst_23 [1] : vector<16x128xf32> to vector<16xf32>
    %50 = vector.shape_cast %49 : vector<16xf32> to vector<16x1xf32>
    %51 = tpu.reciprocal %50 : vector<16x1xf32> -> vector<16x1xf32>
    %52 = vector.broadcast %51 : vector<16x1xf32> to vector<16x128xf32>
    %53 = arith.mulf %48, %52 : vector<16x128xf32>
    %c0_24 = arith.constant 0 : index
    %c0_25 = arith.constant 0 : index
    %54 = vector.load %arg8[%c0_24, %c0_25] : memref<16x128xf32, #tpu.memory_space<vmem>>, vector<16x128xf32>
    tpu.vector_store %arg8[%c0_24, %c0_25], %53 {strides = array<i32>} : memref<16x128xf32, #tpu.memory_space<vmem>>, vector<16x128xf32>,
    return
  }
  func.func @transform_0(%arg0: i32) -> (i32, i32) {
    %c0_i32 = arith.constant 0 : i32
    %c0_i32_0 = arith.constant 0 : i32
    return %arg0, %c0_i32 : i32, i32
  }
  func.func @transform_1(%arg0: i32) -> (i32, i32) {
    %c0_i32 = arith.constant 0 : i32
    %c0_i32_0 = arith.constant 0 : i32
    %c0_i32_1 = arith.constant 0 : i32
    return %c0_i32, %c0_i32_0 : i32, i32
  }
  func.func @transform_2(%arg0: i32) -> (i32, i32) {
    %c0_i32 = arith.constant 0 : i32
    %c0_i32_0 = arith.constant 0 : i32
    %c0_i32_1 = arith.constant 0 : i32
    return %c0_i32, %c0_i32_0 : i32, i32
  }
  func.func @transform_3(%arg0: i32) -> (i32, i32) {
    %c0_i32 = arith.constant 0 : i32
    %c0_i32_0 = arith.constant 0 : i32
    %c0_i32_1 = arith.constant 0 : i32
    return %c0_i32, %c0_i32_0 : i32, i32
  }
  func.func @transform_4(%arg0: i32) -> (i32, i32) {
    %c0_i32 = arith.constant 0 : i32
    %c0_i32_0 = arith.constant 0 : i32
    %c0_i32_1 = arith.constant 0 : i32
    return %c0_i32, %c0_i32_0 : i32, i32
  }
  func.func @transform_5(%arg0: i32) -> (i32, i32) {
    %c0_i32 = arith.constant 0 : i32
    %c0_i32_0 = arith.constant 0 : i32
    %c0_i32_1 = arith.constant 0 : i32
    return %c0_i32, %c0_i32_0 : i32, i32
  }
  func.func @transform_6(%arg0: i32) -> (i32, i32) {
    %c0_i32 = arith.constant 0 : i32
    %c0_i32_0 = arith.constant 0 : i32
    return %arg0, %c0_i32 : i32, i32
  }
  func.func @transform_7(%arg0: i32) -> (i32, i32) {
    %c0_i32 = arith.constant 0 : i32
    %c0_i32_0 = arith.constant 0 : i32
    return %arg0, %c0_i32 : i32, i32
  }
}

</mosaic_0001>

<llo_original>
// kernel: tpu_custom_call.1
$region0: #{tpu_custom_call.1}
  #allocation0 [shape = 'u32[]', space=smem, size = 0x4, offset = 0x4, fixed_abs, tag = 'smem constant byte address 0x4 - core index']
  #allocation1 [shape = 'u32[72,128]{1,0:T(1,128)}', space=vmem, size = 0x9000, scoped, tag = 'internal scratch']
  %s0 = inlined_call_operand.vmem [shape: f32[16,128], index: 0, kind: input, shape index: {}]
  %s1 = inlined_call_operand.vmem [shape: f32[128,64], index: 1, kind: input, shape index: {}]
  %s2 = inlined_call_operand.vmem [shape: f32[64,32], index: 2, kind: input, shape index: {}]
  %s3 = inlined_call_operand.vmem [shape: f32[16,64], index: 3, kind: input, shape index: {}]
  %s4 = inlined_call_operand.vmem [shape: f32[64,128], index: 4, kind: input, shape index: {}]
  %s5 = inlined_call_operand.vmem [shape: f32[4,128], index: 5, kind: input, shape index: {}]
  %s6 = inlined_call_operand.vmem [shape: f32[16,16], index: 6, kind: input, shape index: {}]
  %s7 = inlined_call_operand.hbm [shape: f32[16,128], index: 7, kind: output, shape index: {}]
  %s8 = sld [smem:[#allocation0]]
  $region38: #{tpu_custom_call.1} parent=0
    _
  %s10 = ssub.s32 1, %s8
  %s11 = scalar_select 0, %s10, %s8
  $region1: #{tpu_custom_call.1} parent=0
    #allocation2 [shape = 'u8[8192]{0}', space=vmem, size = 0x2000, scoped, tag = 'output window, operand 0, single buffered']
    #allocation3 [shape = 's32[1]{0}', space=sflag, size = 0x4, scoped, tag = 'scoped memory for tpu_custom_call.1']
    %12 = vsyncpa [#allocation3], 0
    // Predicated region
    $region2: #{tpu_custom_call.1} parent=1 // pred_check
      _
    $region3: #{tpu_custom_call.1} parent=1 // pred_check_branch
      %14 = sbr.rel (0) target = $region5
    $region4: #{tpu_custom_call.1} parent=1 // pred_region
      _
    $region5: #{tpu_custom_call.1} parent=1 // pred_fallthru
      _
    // Predicated region
    $region6: #{tpu_custom_call.1} parent=1 // pred_check
      _
    $region7: #{tpu_custom_call.1} parent=1 // pred_check_branch
      %16 = sbr.rel (0) target = $region9
    $region8: #{tpu_custom_call.1} parent=1 // pred_region
      _
    $region9: #{tpu_custom_call.1} parent=1 // pred_fallthru
      _
    // Predicated region
    $region10: #{tpu_custom_call.1} parent=1 // pred_check
      _
    $region11: #{tpu_custom_call.1} parent=1 // pred_check_branch
      %18 = sbr.rel (0) target = $region13
    $region12: #{tpu_custom_call.1} parent=1 // pred_region
      _
    $region13: #{tpu_custom_call.1} parent=1 // pred_fallthru
      _
    // Predicated region
    $region14: #{tpu_custom_call.1} parent=1 // pred_check
      _
    $region15: #{tpu_custom_call.1} parent=1 // pred_check_branch
      %20 = sbr.rel (0) target = $region17
    $region16: #{tpu_custom_call.1} parent=1 // pred_region
      _
    $region17: #{tpu_custom_call.1} parent=1 // pred_fallthru
      _
    // Predicated region
    $region18: #{tpu_custom_call.1} parent=1 // pred_check
      _
    $region19: #{tpu_custom_call.1} parent=1 // pred_check_branch
      %22 = sbr.rel (0) target = $region21
    $region20: #{tpu_custom_call.1} parent=1 // pred_region
      _
    $region21: #{tpu_custom_call.1} parent=1 // pred_fallthru
      _
    // Predicated region
    $region22: #{tpu_custom_call.1} parent=1 // pred_check
      _
    $region23: #{tpu_custom_call.1} parent=1 // pred_check_branch
      %24 = sbr.rel (0) target = $region25
    $region24: #{tpu_custom_call.1} parent=1 // pred_region
      _
    $region25: #{tpu_custom_call.1} parent=1 // pred_fallthru
      _
    // Predicated region
    $region26: #{tpu_custom_call.1} parent=1 // pred_check
      _
    $region27: #{tpu_custom_call.1} parent=1 // pred_check_branch
      %26 = sbr.rel (0) target = $region29
    $region28: #{tpu_custom_call.1} parent=1 // pred_region
      _
    $region29: #{tpu_custom_call.1} parent=1 // pred_fallthru
      _
    %v27 = vld [vmem:[%s5] sm:$0xf]
    %v28 = vld [vmem:[%s0] sm:$0xff]
    %v29 = vld [vmem:[%s0 + $0x8] sm:$0xff]
    %v30 = vld [vmem:[%s1] sm:$0xff]
    %v31 = vld [vmem:[%s1 + $0x8] sm:$0xff]
    %v32 = vld [vmem:[%s1 + $0x10] sm:$0xff]
    %v33 = vld [vmem:[%s1 + $0x18] sm:$0xff]
    %v34 = vld [vmem:[%s1 + $0x20] sm:$0xff]
    %v35 = vld [vmem:[%s1 + $0x28] sm:$0xff]
    %v36 = vld [vmem:[%s1 + $0x30] sm:$0xff]
    %v37 = vld [vmem:[%s1 + $0x38] sm:$0xff]
    %v38 = vld [vmem:[%s1 + $0x40] sm:$0xff]
    %v39 = vld [vmem:[%s1 + $0x48] sm:$0xff]
    %v40 = vld [vmem:[%s1 + $0x50] sm:$0xff]
    %v41 = vld [vmem:[%s1 + $0x58] sm:$0xff]
    %v42 = vld [vmem:[%s1 + $0x60] sm:$0xff]
    %v43 = vld [vmem:[%s1 + $0x68] sm:$0xff]
    %v44 = vld [vmem:[%s1 + $0x70] sm:$0xff]
    %v45 = vld [vmem:[%s1 + $0x78] sm:$0xff]
    %v46 = vperm.slane %v27, 0
    %47 = vmatpush.msra.mxu0 %v45
    %48 = vmatpush.msra.mxu0 %v44
    %49 = vmatpush.msra.mxu0 %v43
    %50 = vmatpush.msra.mxu0 %v42
    %51 = vmatpush.msra.mxu0 %v41
    %52 = vmatpush.msra.mxu0 %v40
    %53 = vmatpush.msra.mxu0 %v39
    %54 = vmatpush.msra.mxu0 %v38
    %55 = vmatpush.msra.mxu0 %v37
    %56 = vmatpush.msra.mxu0 %v36
    %57 = vmatpush.msra.mxu0 %v35
    %58 = vmatpush.msra.mxu0 %v34
    %59 = vmatpush.msra.mxu0 %v33
    %60 = vmatpush.msra.mxu0 %v32
    %61 = vmatpush.msra.mxu0 %v31
    %62 = vmatpush.msra.mxu0 %v30
    %63 = vmatmul.f32.gmra.mxu0 %v28
    %v64 = vpop.f32.mrf.mxu0
    %v65 = vadd.f32 %v46, %v64
    %66 = vmatmul.f32.gmra.mxu0 %v29
    %v67 = vpop.f32.mrf.mxu0
    %v68 = vadd.f32 %v46, %v67
    %69 = vdwg.mxu0
    %v70 = vmax.f32 %v65, 0.0
    %v71 = vmax.f32 %v68, 0.0
    %v72 = vld [vmem:[%s2] sm:$0xff]
    %v73 = vld [vmem:[%s2 + $0x8] sm:$0xff]
    %v74 = vld [vmem:[%s2 + $0x10] sm:$0xff]
    %v75 = vld [vmem:[%s2 + $0x18] sm:$0xff]
    %v76 = vld [vmem:[%s2 + $0x20] sm:$0xff]
    %v77 = vld [vmem:[%s2 + $0x28] sm:$0xff]
    %v78 = vld [vmem:[%s2 + $0x30] sm:$0xff]
    %v79 = vld [vmem:[%s2 + $0x38] sm:$0xff]
    %v80 = vperm.slane %v27, 1
    %vm81 = vcmask 523264
    %v83 = vsel %vm81, %v70, 0
    %v86 = vsel %vm81, %v71, 0
    %88 = vmatpush.msra.mxu0 0.0
    %89 = vmatpush.msra.mxu0 0.0
    %90 = vmatpush.msra.mxu0 0.0
    %91 = vmatpush.msra.mxu0 0.0
    %92 = vmatpush.msra.mxu0 0.0
    %93 = vmatpush.msra.mxu0 0.0
    %94 = vmatpush.msra.mxu0 0.0
    %95 = vmatpush.msra.mxu0 0.0
    %96 = vmatpush.msra.mxu0 %v79
    %97 = vmatpush.msra.mxu0 %v78
    %98 = vmatpush.msra.mxu0 %v77
    %99 = vmatpush.msra.mxu0 %v76
    %100 = vmatpush.msra.mxu0 %v75
    %101 = vmatpush.msra.mxu0 %v74
    %102 = vmatpush.msra.mxu0 %v73
    %103 = vmatpush.msra.mxu0 %v72
    %104 = vmatmul.f32.gmra.mxu0 %v83
    %v105 = vpop.f32.mrf.mxu0
    %v106 = vadd.f32 %v80, %v105
    %107 = vmatmul.f32.gmra.mxu0 %v86
    %v108 = vpop.f32.mrf.mxu0
    %v109 = vadd.f32 %v80, %v108
    %110 = vdwg.mxu0
    %v111 = vmax.f32 %v106, 0.0
    %v112 = vmax.f32 %v109, 0.0
    %v113 = vand.u32 2147483647, %v106
    %v114 = vand.u32 2147483647, %v109
    %v115 = vsub.f32 0.0, %v113
    %v116 = vsub.f32 0.0, %v114
    %v117 = vmul.f32 %v115, 1.442695
    %v118 = vpow.pop %v117
    %v119 = vmul.f32 %v116, 1.442695
    %v120 = vpow.pop %v119
    %v121 = vadd.f32 %v118, 1.0
    %v122 = vlog2.pop %v121
    %v123 = vmul.f32 %v122, 0.6931472
    %v124 = vmul.f32 -0.5, %v118
    %v125 = vadd.f32 %v124, 1.0
    %v126 = vmul.f32 %v125, %v118
    %v127 = vand.u32 2147483647, %v118
    %vm128 = vcmp.lt.f32.partialorder %v127, 0.0004427343
    %v129 = vsel %vm128, %v126, %v123
    %v130 = vadd.f32 %v120, 1.0
    %v131 = vlog2.pop %v130
    %v132 = vmul.f32 %v131, 0.6931472
    %v133 = vmul.f32 -0.5, %v120
    %v134 = vadd.f32 %v133, 1.0
    %v135 = vmul.f32 %v134, %v120
    %v136 = vand.u32 2147483647, %v120
    %vm137 = vcmp.lt.f32.partialorder %v136, 0.0004427343
    %v138 = vsel %vm137, %v135, %v132
    %v139 = vadd.f32 %v111, %v129
    %v140 = vadd.f32 %v112, %v138
    %v141 = vld [vmem:[%s6] sm:$0xff]
    %v142 = vld [vmem:[%s6 + $0x8] sm:$0xff]
    %v143 = vmul.f32 %v139, 0.5
    %v144 = vmul.f32 %v140, 0.5
    %v145 = vmul.f32 %v143, 1.442695
    %v146 = vpow.pop %v145
    %v147 = vmul.f32 %v144, 1.442695
    %v148 = vpow.pop %v147
    %151 = vrot.lane.b32.xlu0 %v146, 112
    %v152 = vpop.permute.xlu0 %151
    %153 = vrot.lane.b32.xlu0 %v148, 112
    %v154 = vpop.permute.xlu0 %153
    %v157 = vmul.f32 %v141, %v152
    %v158 = vmul.f32 %v142, %v154
    %v159 = vadd.f32 %v106, %v157
    %v160 = vadd.f32 %v109, %v158
    %v161 = vld [vmem:[%s3] sm:$0xff]
    %v162 = vld [vmem:[%s3 + $0x8] sm:$0xff]
    %v163 = vperm.slane %v27, 2
    %vm164 = vcmask 130048
    %v166 = vsel %vm164, %v159, 0
    %v169 = vsel %vm164, %v160, 0
    %171 = vmatpush.msra.mxu0 0.0
    %172 = vmatpush.msra.mxu0 0.0
    %173 = vmatpush.msra.mxu0 0.0
    %174 = vmatpush.msra.mxu0 0.0
    %175 = vmatpush.msra.mxu0 0.0
    %176 = vmatpush.msra.mxu0 0.0
    %177 = vmatpush.msra.mxu0 0.0
    %178 = vmatpush.msra.mxu0 0.0
    %179 = vmatpush.msra.mxu0 0.0
    %180 = vmatpush.msra.mxu0 0.0
    %181 = vmatpush.msra.mxu0 0.0
    %182 = vmatpush.msra.mxu0 0.0
    %183 = vmatpush.msra.mxu0 0.0
    %184 = vmatpush.msra.mxu0 0.0
    %185 = vmatpush.msra.mxu0 %v162
    %186 = vmatpush.msra.mxu0 %v161
    %187 = vmatmul.f32.gmra.mxu0 %v166
    %v188 = vpop.f32.mrf.mxu0
    %v189 = vadd.f32 %v163, %v188
    %190 = vmatmul.f32.gmra.mxu0 %v169
    %v191 = vpop.f32.mrf.mxu0
    %v192 = vadd.f32 %v163, %v191
    %193 = vdwg.mxu0
    %v194 = vmax.f32 %v189, 0.0
    %v195 = vmax.f32 %v192, 0.0
    %v196 = vld [vmem:[%s4] sm:$0xff]
    %v197 = vld [vmem:[%s4 + $0x8] sm:$0xff]
    %v198 = vld [vmem:[%s4 + $0x10] sm:$0xff]
    %v199 = vld [vmem:[%s4 + $0x18] sm:$0xff]
    %v200 = vld [vmem:[%s4 + $0x20] sm:$0xff]
    %v201 = vld [vmem:[%s4 + $0x28] sm:$0xff]
    %v202 = vld [vmem:[%s4 + $0x30] sm:$0xff]
    %v203 = vld [vmem:[%s4 + $0x38] sm:$0xff]
    %v204 = vperm.slane %v27, 3
    %v206 = vsel %vm81, %v194, 0
    %v209 = vsel %vm81, %v195, 0
    %211 = vmatpush.msra.mxu0 0.0
    %212 = vmatpush.msra.mxu0 0.0
    %213 = vmatpush.msra.mxu0 0.0
    %214 = vmatpush.msra.mxu0 0.0
    %215 = vmatpush.msra.mxu0 0.0
    %216 = vmatpush.msra.mxu0 0.0
    %217 = vmatpush.msra.mxu0 0.0
    %218 = vmatpush.msra.mxu0 0.0
    %219 = vmatpush.msra.mxu0 %v203
    %220 = vmatpush.msra.mxu0 %v202
    %221 = vmatpush.msra.mxu0 %v201
    %222 = vmatpush.msra.mxu0 %v200
    %223 = vmatpush.msra.mxu0 %v199
    %224 = vmatpush.msra.mxu0 %v198
    %225 = vmatpush.msra.mxu0 %v197
    %226 = vmatpush.msra.mxu0 %v196
    %227 = vmatmul.f32.gmra.mxu0 %v206
    %v228 = vpop.f32.mrf.mxu0
    %v229 = vadd.f32 %v204, %v228
    %230 = vmatmul.f32.gmra.mxu0 %v209
    %v231 = vpop.f32.mrf.mxu0
    %v232 = vadd.f32 %v204, %v231
    %233 = vdwg.mxu0
    %v234 = vmax.f32 %v229, 0.0
    %v235 = vmax.f32 %v232, 0.0
    %236 = vmax.xlane.f32.xlu0 %v234
    %v237 = vpop.xlane.xlu0 %236
    %238 = vmax.xlane.f32.xlu0 %v235
    %v239 = vpop.xlane.xlu0 %238
    %v240 = vsub.f32 %v234, %v237
    %v241 = vsub.f32 %v235, %v239
    %v242 = vmul.f32 %v240, 1.442695
    %v243 = vpow.pop %v242
    %v244 = vmul.f32 %v241, 1.442695
    %v245 = vpow.pop %v244
    %246 = vadd.xlane.f32.xlu0 %v243
    %v247 = vpop.xlane.xlu0 %246
    %248 = vadd.xlane.f32.xlu0 %v245
    %v249 = vpop.xlane.xlu0 %248
    %v250 = vrcp.pop %v247
    %v251 = vmul.f32 %v247, %v250
    %v252 = vsub.f32 1.0, %v251
    %v253 = vmul.f32 %v250, %v252
    %v254 = vadd.f32 %v250, %v253
    %vm255 = vweird.f32 %v247
    %vm256 = vweird.f32 %v250
    %vm257 = vmor %vm255, %vm256
    %v258 = vsel %vm257, %v250, %v254
    %v259 = vand.u32 2147483647, %v247
    %vm260 = vcmp.eq.f32.partialorder %v259, 8.507059e+37
    %v261 = vand.u32 %v247, 2147483648
    %v262 = vor.u32 1.1754944e-38, %v261
    %v263 = vsel %vm260, %v262, %v258
    %v264 = vrcp.pop %v249
    %v265 = vmul.f32 %v249, %v264
    %v266 = vsub.f32 1.0, %v265
    %v267 = vmul.f32 %v264, %v266
    %v268 = vadd.f32 %v264, %v267
    %vm269 = vweird.f32 %v249
    %vm270 = vweird.f32 %v264
    %vm271 = vmor %vm269, %vm270
    %v272 = vsel %vm271, %v264, %v268
    %v273 = vand.u32 2147483647, %v249
    %vm274 = vcmp.eq.f32.partialorder %v273, 8.507059e+37
    %v275 = vand.u32 %v249, 2147483648
    %v276 = vor.u32 1.1754944e-38, %v275
    %v277 = vsel %vm274, %v276, %v272
    %v278 = vmul.f32 %v243, %v263
    %v279 = vmul.f32 %v245, %v277
    %280 = vst [vmem:[#allocation2] sm:$0xff] %v278
    %281 = vst [vmem:[#allocation2 + $0x8] sm:$0xff] %v279
    // Predicated region
    $region30: #{tpu_custom_call.1} parent=1 // pred_check
      _
    $region31: #{tpu_custom_call.1} parent=1 // pred_check_branch
      %283 = sbr.rel (0) target = $region33
    $region32: #{tpu_custom_call.1} parent=1 // pred_region
      %285 = vsyncadd [#allocation3], 0
      %s286 = sshll.u32 [#allocation2], 4
      %s287 = int_to_ptr.vmem [resolvable:$true] %s286
      %s288 = sshll.u32 %s7, 4
      %s289 = int_to_ptr.hbm [resolvable:$true] %s288
      %294 = dma.vmem_to_hbm [thread:$0]  %s287, 256, %s289, [#allocation3], 128, 128, 8
    $region33: #{tpu_custom_call.1} parent=1 // pred_fallthru
      _
    // Predicated region
    $region34: #{tpu_custom_call.1} parent=1 // pred_check
      _
    $region35: #{tpu_custom_call.1} parent=1 // pred_check_branch
      %296 = sbr.rel (0) target = $region37
    $region36: #{tpu_custom_call.1} parent=1 // pred_region
      %298 = dma.done [#allocation3], 256
    $region37: #{tpu_custom_call.1} parent=1 // pred_fallthru
      _
    %299 = vsyncpa [#allocation3], 1

</llo_original>
